<compile_context>
chip_gen: v5e
topology: v5e:2x2
jax: 0.10.0
libtpu: 0.0.40
codegen_flags: <defaults>
</compile_context>

<pallas_src>
import functools
import math

import jax
import jax.numpy as jnp
from jax.experimental import pallas as pl
from jax.experimental.pallas import tpu as pltpu


def _round_up(a, b):
    return ((a + b - 1) // b) * b


def _attn_encoder_kernel(x_ref, nb_ref, o_ref, *, k, h, scale):
    """One row-tile: x_ref (tm, H), nb_ref (tm, K*H) lane-folded, o_ref (tm, H)."""
    f32 = jnp.float32

    x = x_ref[...].astype(f32)                                      # (tm, H)
    # Per-neighbor segments of the lane-folded block (static slices).
    nb = [nb_ref[:, j * h:(j + 1) * h].astype(f32) for j in range(k)]   # K x (tm, H)

    # scores_j = <x, neighbor_j> / sqrt(H)  — exact f32 lane reduction (VPU/XLU).
    s = [jnp.sum(x * nb[j], axis=-1, keepdims=True) * scale for j in range(k)]

    # Numerically-stable softmax over the K neighbors (tiny (tm, 1) columns).
    m = s[0]
    for j in range(1, k):
        m = jnp.maximum(m, s[j])
    e = [jnp.exp(s[j] - m) for j in range(k)]
    denom = e[0]
    for j in range(1, k):
        denom = denom + e[j]
    inv = 1.0 / denom            # exact f32 divide; only (tm, 1) elements

    # out = x + sum_j p_j * neighbor_j   (p_j broadcast over the H lanes)
    acc = x
    for j in range(k):
        acc = acc + (e[j] * inv) * nb[j]
    o_ref[...] = acc.astype(o_ref.dtype)


@functools.partial(jax.jit, static_argnames=("tm",))
def attention_encoder(x, neighbor, *, tm=1024):
    """x: (B, N, H), neighbor: (B, N, K, H) -> (B, N, H)."""
    B, N, H = x.shape
    _, _, K, _ = neighbor.shape
    BN = B * N
    KH = K * H

    # Row-major contiguous reshapes: no HBM copy.
    x_flat = x.reshape(BN, H)
    nb_flat = neighbor.reshape(BN, KH)      # lane-fold k into the minor dim

    # Row tile: multiple of 8 sublanes.  No padding of the inputs — the last
    # grid block may be ragged (OOB reads are per-row garbage, OOB writes are
    # dropped by Pallas), so valid rows are unaffected.
    if BN <= 8:
        tm_eff = BN                          # block == full array dims
    else:
        tm_eff = max(8, min(_round_up(tm, 8), _round_up(BN, 8)))
        # Prefer >= 2 grid steps (pipelining / v7x megacore) when rows allow,
        # without dropping below 512-row tiles (per-step overhead).
        while tm_eff > 512 and pl.cdiv(BN, tm_eff) < 2:
            tm_eff = max(512, _round_up(tm_eff // 2, 8))
    grid = pl.cdiv(BN, tm_eff)

    kernel = functools.partial(
        _attn_encoder_kernel, k=K, h=H, scale=1.0 / math.sqrt(float(H)))

    out_flat = pl.pallas_call(
        kernel,
        out_shape=jax.ShapeDtypeStruct((BN, H), x.dtype),
        grid_spec=pltpu.PrefetchScalarGridSpec(
            num_scalar_prefetch=0,
            grid=(grid,),
            in_specs=[
                pl.BlockSpec((tm_eff, H), lambda i: (i, 0)),    # x rows
                pl.BlockSpec((tm_eff, KH), lambda i: (i, 0)),   # neighbors, lane-dense
            ],
            out_specs=pl.BlockSpec((tm_eff, H), lambda i: (i, 0)),
        ),
        compiler_params=pltpu.CompilerParams(
            dimension_semantics=("parallel",),
            vmem_limit_bytes=32 * 1024 * 1024,
        ),
    )(x_flat, nb_flat)

    return out_flat.reshape(B, N, H)


def attention_encoder_ref(x, neighbor):
    """Plain-JAX reference mirroring the PyTorch AttentionEncoder.forward."""
    H = x.shape[-1]
    scores = jnp.sum(x[:, :, None, :] * neighbor, axis=-1) / jnp.sqrt(jnp.float32(H))
    p = jax.nn.softmax(scores, axis=-1)                     # (B, N, K)
    return x + jnp.sum(p[..., None] * neighbor, axis=2)     # (B, N, H)


if __name__ == "__main__":
    key = jax.random.PRNGKey(0)
    B, N, K, H = 2, 64, 4, 32      # node_hidden_dim=32, k=4 neighbors

    kx, kn = jax.random.split(key)
    x = jax.random.normal(kx, (B, N, H), dtype=jnp.float32)
    neighbor = jax.random.normal(kn, (B, N, K, H), dtype=jnp.float32)

    # 1) Default path: 128 rows, single grid step, lane-dense K*H = 128 blocks.
    out = jax.block_until_ready(attention_encoder(x, neighbor))
    ref = attention_encoder_ref(x, neighbor)
    assert out.shape == (B, N, H)
    assert jnp.allclose(out, ref, atol=2e-5, rtol=2e-5), "mismatch (default)"

    # 2) Ragged multi-step grid: 100 rows with tm=32 -> 4 steps, last block ragged
    #    (no input padding; OOB writes dropped).
    xs, ns = x[:, :50], neighbor[:, :50]
    out2 = jax.block_until_ready(attention_encoder(xs, ns, tm=32))
    ref2 = attention_encoder_ref(xs, ns)
    assert jnp.allclose(out2, ref2, atol=2e-5, rtol=2e-5), "mismatch (ragged grid)"

    # 3) Tiny input: tile clamps to the row count, single grid step.
    xt, nt = x[:1, :8], neighbor[:1, :8]
    out3 = jax.block_until_ready(attention_encoder(xt, nt))
    ref3 = attention_encoder_ref(xt, nt)
    assert jnp.allclose(out3, ref3, atol=2e-5, rtol=2e-5), "mismatch (tiny input)"

    print("KERNEL_OK")
</pallas_src>

<mosaic_0001>
module attributes {stable_mosaic.version = 11 : i64} {
  func.func @_attn_encoder_kernel(%arg0: i32, %arg1: memref<128x32xf32, #tpu.memory_space<vmem>>, %arg2: memref<128x128xf32, #tpu.memory_space<vmem>>, %arg3: memref<128x32xf32, #tpu.memory_space<vmem>>) attributes {dimension_semantics = [#tpu.dimension_semantics<parallel>], iteration_bounds = array<i64: 1>, scalar_prefetch = 0 : i64, scratch_operands = 0 : i64, tpu.core_type = #tpu.core_type<tc>, window_params = [{transform_indices = @transform_0, window_bounds = array<i64: 128, 32>}, {transform_indices = @transform_1, window_bounds = array<i64: 128, 128>}, {transform_indices = @transform_2, window_bounds = array<i64: 128, 32>}]} {
    %c0 = arith.constant 0 : index
    %c0_0 = arith.constant 0 : index
    %0 = vector.load %arg1[%c0, %c0_0] : memref<128x32xf32, #tpu.memory_space<vmem>>, vector<128x32xf32>
    %c0_1 = arith.constant 0 : index
    %c0_2 = arith.constant 0 : index
    %1 = vector.load %arg2[%c0_1, %c0_2] : memref<128x128xf32, #tpu.memory_space<vmem>>, vector<128x32xf32>
    %c0_3 = arith.constant 0 : index
    %c32 = arith.constant 32 : index
    %2 = vector.load %arg2[%c0_3, %c32] : memref<128x128xf32, #tpu.memory_space<vmem>>, vector<128x32xf32>
    %c0_4 = arith.constant 0 : index
    %c64 = arith.constant 64 : index
    %3 = vector.load %arg2[%c0_4, %c64] : memref<128x128xf32, #tpu.memory_space<vmem>>, vector<128x32xf32>
    %c0_5 = arith.constant 0 : index
    %c96 = arith.constant 96 : index
    %4 = vector.load %arg2[%c0_5, %c96] : memref<128x128xf32, #tpu.memory_space<vmem>>, vector<128x32xf32>
    %5 = arith.mulf %0, %1 : vector<128x32xf32>
    %cst = arith.constant dense<0.000000e+00> : vector<128xf32>
    %6 = vector.multi_reduction <add>, %5, %cst [1] : vector<128x32xf32> to vector<128xf32>
    %7 = vector.shape_cast %6 : vector<128xf32> to vector<128x1xf32>
    %cst_6 = arith.constant 0.176776692 : f32
    %8 = vector.broadcast %cst_6 : f32 to vector<128x1xf32>
    %9 = arith.mulf %7, %8 : vector<128x1xf32>
    %10 = arith.mulf %0, %2 : vector<128x32xf32>
    %cst_7 = arith.constant dense<0.000000e+00> : vector<128xf32>
    %11 = vector.multi_reduction <add>, %10, %cst_7 [1] : vector<128x32xf32> to vector<128xf32>
    %12 = vector.shape_cast %11 : vector<128xf32> to vector<128x1xf32>
    %cst_8 = arith.constant 0.176776692 : f32
    %13 = vector.broadcast %cst_8 : f32 to vector<128x1xf32>
    %14 = arith.mulf %12, %13 : vector<128x1xf32>
    %15 = arith.mulf %0, %3 : vector<128x32xf32>
    %cst_9 = arith.constant dense<0.000000e+00> : vector<128xf32>
    %16 = vector.multi_reduction <add>, %15, %cst_9 [1] : vector<128x32xf32> to vector<128xf32>
    %17 = vector.shape_cast %16 : vector<128xf32> to vector<128x1xf32>
    %cst_10 = arith.constant 0.176776692 : f32
    %18 = vector.broadcast %cst_10 : f32 to vector<128x1xf32>
    %19 = arith.mulf %17, %18 : vector<128x1xf32>
    %20 = arith.mulf %0, %4 : vector<128x32xf32>
    %cst_11 = arith.constant dense<0.000000e+00> : vector<128xf32>
    %21 = vector.multi_reduction <add>, %20, %cst_11 [1] : vector<128x32xf32> to vector<128xf32>
    %22 = vector.shape_cast %21 : vector<128xf32> to vector<128x1xf32>
    %cst_12 = arith.constant 0.176776692 : f32
    %23 = vector.broadcast %cst_12 : f32 to vector<128x1xf32>
    %24 = arith.mulf %22, %23 : vector<128x1xf32>
    %25 = arith.maximumf %9, %14 : vector<128x1xf32>
    %26 = arith.maximumf %25, %19 : vector<128x1xf32>
    %27 = arith.maximumf %26, %24 : vector<128x1xf32>
    %28 = arith.subf %9, %27 : vector<128x1xf32>
    %29 = math.exp %28 : vector<128x1xf32>
    %30 = arith.subf %14, %27 : vector<128x1xf32>
    %31 = math.exp %30 : vector<128x1xf32>
    %32 = arith.subf %19, %27 : vector<128x1xf32>
    %33 = math.exp %32 : vector<128x1xf32>
    %34 = arith.subf %24, %27 : vector<128x1xf32>
    %35 = math.exp %34 : vector<128x1xf32>
    %36 = arith.addf %29, %31 : vector<128x1xf32>
    %37 = arith.addf %36, %33 : vector<128x1xf32>
    %38 = arith.addf %37, %35 : vector<128x1xf32>
    %cst_13 = arith.constant 1.000000e+00 : f32
    %39 = vector.broadcast %cst_13 : f32 to vector<128x1xf32>
    %40 = arith.divf %39, %38 : vector<128x1xf32>
    %41 = arith.mulf %29, %40 : vector<128x1xf32>
    %42 = vector.broadcast %41 : vector<128x1xf32> to vector<128x32xf32>
    %43 = arith.mulf %42, %1 : vector<128x32xf32>
    %44 = arith.addf %0, %43 : vector<128x32xf32>
    %45 = arith.mulf %31, %40 : vector<128x1xf32>
    %46 = vector.broadcast %45 : vector<128x1xf32> to vector<128x32xf32>
    %47 = arith.mulf %46, %2 : vector<128x32xf32>
    %48 = arith.addf %44, %47 : vector<128x32xf32>
    %49 = arith.mulf %33, %40 : vector<128x1xf32>
    %50 = vector.broadcast %49 : vector<128x1xf32> to vector<128x32xf32>
    %51 = arith.mulf %50, %3 : vector<128x32xf32>
    %52 = arith.addf %48, %51 : vector<128x32xf32>
    %53 = arith.mulf %35, %40 : vector<128x1xf32>
    %54 = vector.broadcast %53 : vector<128x1xf32> to vector<128x32xf32>
    %55 = arith.mulf %54, %4 : vector<128x32xf32>
    %56 = arith.addf %52, %55 : vector<128x32xf32>
    %c0_14 = arith.constant 0 : index
    %c0_15 = arith.constant 0 : index
    %57 = vector.load %arg3[%c0_14, %c0_15] : memref<128x32xf32, #tpu.memory_space<vmem>>, vector<128x32xf32>
    tpu.vector_store %arg3[%c0_14, %c0_15], %56 {strides = array<i32>} : memref<128x32xf32, #tpu.memory_space<vmem>>, vector<128x32xf32>,
    return
  }
  func.func @transform_0(%arg0: i32) -> (i32, i32) {
    %c0_i32 = arith.constant 0 : i32
    %c0_i32_0 = arith.constant 0 : i32
    return %arg0, %c0_i32 : i32, i32
  }
  func.func @transform_1(%arg0: i32) -> (i32, i32) {
    %c0_i32 = arith.constant 0 : i32
    %c0_i32_0 = arith.constant 0 : i32
    return %arg0, %c0_i32 : i32, i32
  }
  func.func @transform_2(%arg0: i32) -> (i32, i32) {
    %c0_i32 = arith.constant 0 : i32
    %c0_i32_0 = arith.constant 0 : i32
    return %arg0, %c0_i32 : i32, i32
  }
}

</mosaic_0001>

<llo_original>
// kernel: attention_encoder.1
$region0: #{attention_encoder.1}
  #allocation0 [shape = 'u32[]', space=smem, size = 0x4, offset = 0x4, fixed_abs, tag = 'smem constant byte address 0x4 - core index']
  #allocation1 [shape = 'u32[72,128]{1,0:T(1,128)}', space=vmem, size = 0x9000, scoped, tag = 'internal scratch']
  %s0 = inlined_call_operand.vmem [shape: f32[128,32], index: 0, kind: input, shape index: {}]
  %s1 = inlined_call_operand.vmem [shape: f32[128,128], index: 1, kind: input, shape index: {}]
  %s2 = inlined_call_operand.vmem [shape: f32[128,32], index: 2, kind: output, shape index: {}]
  %s3 = sld [smem:[#allocation0]]
  $region18: #{attention_encoder.1} parent=0
    _
  %s5 = ssub.s32 1, %s3
  %s6 = scalar_select 0, %s5, %s3
  // Predicated region
  $region2: #{attention_encoder.1} parent=0 // pred_check
    _
  $region3: #{attention_encoder.1} parent=0 // pred_check_branch
    %8 = sbr.rel (0) target = $region5
  $region4: #{attention_encoder.1} parent=0 // pred_region
    _
  $region5: #{attention_encoder.1} parent=0 // pred_fallthru
    _
  // Predicated region
  $region6: #{attention_encoder.1} parent=0 // pred_check
    _
  $region7: #{attention_encoder.1} parent=0 // pred_check_branch
    %10 = sbr.rel (0) target = $region9
  $region8: #{attention_encoder.1} parent=0 // pred_region
    _
  $region9: #{attention_encoder.1} parent=0 // pred_fallthru
    _
  %v11 = vld [vmem:[%s0] sm:$0xff]
  %v12 = vld [vmem:[%s0 + $0x8] sm:$0xff]
  %v13 = vld [vmem:[%s0 + $0x10] sm:$0xff]
  %v14 = vld [vmem:[%s0 + $0x18] sm:$0xff]
  %v15 = vld [vmem:[%s0 + $0x20] sm:$0xff]
  %v16 = vld [vmem:[%s0 + $0x28] sm:$0xff]
  %v17 = vld [vmem:[%s0 + $0x30] sm:$0xff]
  %v18 = vld [vmem:[%s0 + $0x38] sm:$0xff]
  %v19 = vld [vmem:[%s0 + $0x40] sm:$0xff]
  %v20 = vld [vmem:[%s0 + $0x48] sm:$0xff]
  %v21 = vld [vmem:[%s0 + $0x50] sm:$0xff]
  %v22 = vld [vmem:[%s0 + $0x58] sm:$0xff]
  %v23 = vld [vmem:[%s0 + $0x60] sm:$0xff]
  %v24 = vld [vmem:[%s0 + $0x68] sm:$0xff]
  %v25 = vld [vmem:[%s0 + $0x70] sm:$0xff]
  %v26 = vld [vmem:[%s0 + $0x78] sm:$0xff]
  %v27 = vld [vmem:[%s1] sm:$0xff]
  %v28 = vld [vmem:[%s1 + $0x8] sm:$0xff]
  %v29 = vld [vmem:[%s1 + $0x10] sm:$0xff]
  %v30 = vld [vmem:[%s1 + $0x18] sm:$0xff]
  %v31 = vld [vmem:[%s1 + $0x20] sm:$0xff]
  %v32 = vld [vmem:[%s1 + $0x28] sm:$0xff]
  %v33 = vld [vmem:[%s1 + $0x30] sm:$0xff]
  %v34 = vld [vmem:[%s1 + $0x38] sm:$0xff]
  %v35 = vld [vmem:[%s1 + $0x40] sm:$0xff]
  %v36 = vld [vmem:[%s1 + $0x48] sm:$0xff]
  %v37 = vld [vmem:[%s1 + $0x50] sm:$0xff]
  %v38 = vld [vmem:[%s1 + $0x58] sm:$0xff]
  %v39 = vld [vmem:[%s1 + $0x60] sm:$0xff]
  %v40 = vld [vmem:[%s1 + $0x68] sm:$0xff]
  %v41 = vld [vmem:[%s1 + $0x70] sm:$0xff]
  %v42 = vld [vmem:[%s1 + $0x78] sm:$0xff]
  %v43 = vmul.f32 %v11, %v27
  %v44 = vmul.f32 %v12, %v28
  %v45 = vmul.f32 %v13, %v29
  %v46 = vmul.f32 %v14, %v30
  %v47 = vmul.f32 %v15, %v31
  %v48 = vmul.f32 %v16, %v32
  %v49 = vmul.f32 %v17, %v33
  %v50 = vmul.f32 %v18, %v34
  %v51 = vmul.f32 %v19, %v35
  %v52 = vmul.f32 %v20, %v36
  %v53 = vmul.f32 %v21, %v37
  %v54 = vmul.f32 %v22, %v38
  %v55 = vmul.f32 %v23, %v39
  %v56 = vmul.f32 %v24, %v40
  %v57 = vmul.f32 %v25, %v41
  %v58 = vmul.f32 %v26, %v42
  %vm59 = vcmask 261120
  %v60 = vsel %vm59, %v43, 0.0
  %61 = vadd.xlane.f32.xlu0 %v60
  %v62 = vpop.xlane.xlu0 %61
  %v63 = vsel %vm59, %v44, 0.0
  %64 = vadd.xlane.f32.xlu0 %v63
  %v65 = vpop.xlane.xlu0 %64
  %v66 = vsel %vm59, %v45, 0.0
  %67 = vadd.xlane.f32.xlu0 %v66
  %v68 = vpop.xlane.xlu0 %67
  %v69 = vsel %vm59, %v46, 0.0
  %70 = vadd.xlane.f32.xlu0 %v69
  %v71 = vpop.xlane.xlu0 %70
  %v72 = vsel %vm59, %v47, 0.0
  %73 = vadd.xlane.f32.xlu0 %v72
  %v74 = vpop.xlane.xlu0 %73
  %v75 = vsel %vm59, %v48, 0.0
  %76 = vadd.xlane.f32.xlu0 %v75
  %v77 = vpop.xlane.xlu0 %76
  %v78 = vsel %vm59, %v49, 0.0
  %79 = vadd.xlane.f32.xlu0 %v78
  %v80 = vpop.xlane.xlu0 %79
  %v81 = vsel %vm59, %v50, 0.0
  %82 = vadd.xlane.f32.xlu0 %v81
  %v83 = vpop.xlane.xlu0 %82
  %v84 = vsel %vm59, %v51, 0.0
  %85 = vadd.xlane.f32.xlu0 %v84
  %v86 = vpop.xlane.xlu0 %85
  %v87 = vsel %vm59, %v52, 0.0
  %88 = vadd.xlane.f32.xlu0 %v87
  %v89 = vpop.xlane.xlu0 %88
  %v90 = vsel %vm59, %v53, 0.0
  %91 = vadd.xlane.f32.xlu0 %v90
  %v92 = vpop.xlane.xlu0 %91
  %v93 = vsel %vm59, %v54, 0.0
  %94 = vadd.xlane.f32.xlu0 %v93
  %v95 = vpop.xlane.xlu0 %94
  %v96 = vsel %vm59, %v55, 0.0
  %97 = vadd.xlane.f32.xlu0 %v96
  %v98 = vpop.xlane.xlu0 %97
  %v99 = vsel %vm59, %v56, 0.0
  %100 = vadd.xlane.f32.xlu0 %v99
  %v101 = vpop.xlane.xlu0 %100
  %v102 = vsel %vm59, %v57, 0.0
  %103 = vadd.xlane.f32.xlu0 %v102
  %v104 = vpop.xlane.xlu0 %103
  %v105 = vsel %vm59, %v58, 0.0
  %106 = vadd.xlane.f32.xlu0 %v105
  %v107 = vpop.xlane.xlu0 %106
  %v108 = vmul.f32 %v62, 0.17677669
  %v109 = vmul.f32 %v65, 0.17677669
  %v110 = vmul.f32 %v68, 0.17677669
  %v111 = vmul.f32 %v71, 0.17677669
  %v112 = vmul.f32 %v74, 0.17677669
  %v113 = vmul.f32 %v77, 0.17677669
  %v114 = vmul.f32 %v80, 0.17677669
  %v115 = vmul.f32 %v83, 0.17677669
  %v116 = vmul.f32 %v86, 0.17677669
  %v117 = vmul.f32 %v89, 0.17677669
  %v118 = vmul.f32 %v92, 0.17677669
  %v119 = vmul.f32 %v95, 0.17677669
  %v120 = vmul.f32 %v98, 0.17677669
  %v121 = vmul.f32 %v101, 0.17677669
  %v122 = vmul.f32 %v104, 0.17677669
  %v123 = vmul.f32 %v107, 0.17677669
  %140 = vrot.lane.b32.xlu0 %v27, 96
  %v141 = vpop.permute.xlu0 %140
  %142 = vrot.lane.b32.xlu0 %v28, 96
  %v143 = vpop.permute.xlu0 %142
  %144 = vrot.lane.b32.xlu0 %v29, 96
  %v145 = vpop.permute.xlu0 %144
  %146 = vrot.lane.b32.xlu0 %v30, 96
  %v147 = vpop.permute.xlu0 %146
  %148 = vrot.lane.b32.xlu0 %v31, 96
  %v149 = vpop.permute.xlu0 %148
  %150 = vrot.lane.b32.xlu0 %v32, 96
  %v151 = vpop.permute.xlu0 %150
  %152 = vrot.lane.b32.xlu0 %v33, 96
  %v153 = vpop.permute.xlu0 %152
  %154 = vrot.lane.b32.xlu0 %v34, 96
  %v155 = vpop.permute.xlu0 %154
  %156 = vrot.lane.b32.xlu0 %v35, 96
  %v157 = vpop.permute.xlu0 %156
  %158 = vrot.lane.b32.xlu0 %v36, 96
  %v159 = vpop.permute.xlu0 %158
  %160 = vrot.lane.b32.xlu0 %v37, 96
  %v161 = vpop.permute.xlu0 %160
  %162 = vrot.lane.b32.xlu0 %v38, 96
  %v163 = vpop.permute.xlu0 %162
  %164 = vrot.lane.b32.xlu0 %v39, 96
  %v165 = vpop.permute.xlu0 %164
  %166 = vrot.lane.b32.xlu0 %v40, 96
  %v167 = vpop.permute.xlu0 %166
  %168 = vrot.lane.b32.xlu0 %v41, 96
  %v169 = vpop.permute.xlu0 %168
  %170 = vrot.lane.b32.xlu0 %v42, 96
  %v171 = vpop.permute.xlu0 %170
  %v188 = vmul.f32 %v11, %v141
  %v189 = vmul.f32 %v12, %v143
  %v190 = vmul.f32 %v13, %v145
  %v191 = vmul.f32 %v14, %v147
  %v192 = vmul.f32 %v15, %v149
  %v193 = vmul.f32 %v16, %v151
  %v194 = vmul.f32 %v17, %v153
  %v195 = vmul.f32 %v18, %v155
  %v196 = vmul.f32 %v19, %v157
  %v197 = vmul.f32 %v20, %v159
  %v198 = vmul.f32 %v21, %v161
  %v199 = vmul.f32 %v22, %v163
  %v200 = vmul.f32 %v23, %v165
  %v201 = vmul.f32 %v24, %v167
  %v202 = vmul.f32 %v25, %v169
  %v203 = vmul.f32 %v26, %v171
  %v204 = vsel %vm59, %v188, 0.0
  %205 = vadd.xlane.f32.xlu0 %v204
  %v206 = vpop.xlane.xlu0 %205
  %v207 = vsel %vm59, %v189, 0.0
  %208 = vadd.xlane.f32.xlu0 %v207
  %v209 = vpop.xlane.xlu0 %208
  %v210 = vsel %vm59, %v190, 0.0
  %211 = vadd.xlane.f32.xlu0 %v210
  %v212 = vpop.xlane.xlu0 %211
  %v213 = vsel %vm59, %v191, 0.0
  %214 = vadd.xlane.f32.xlu0 %v213
  %v215 = vpop.xlane.xlu0 %214
  %v216 = vsel %vm59, %v192, 0.0
  %217 = vadd.xlane.f32.xlu0 %v216
  %v218 = vpop.xlane.xlu0 %217
  %v219 = vsel %vm59, %v193, 0.0
  %220 = vadd.xlane.f32.xlu0 %v219
  %v221 = vpop.xlane.xlu0 %220
  %v222 = vsel %vm59, %v194, 0.0
  %223 = vadd.xlane.f32.xlu0 %v222
  %v224 = vpop.xlane.xlu0 %223
  %v225 = vsel %vm59, %v195, 0.0
  %226 = vadd.xlane.f32.xlu0 %v225
  %v227 = vpop.xlane.xlu0 %226
  %v228 = vsel %vm59, %v196, 0.0
  %229 = vadd.xlane.f32.xlu0 %v228
  %v230 = vpop.xlane.xlu0 %229
  %v231 = vsel %vm59, %v197, 0.0
  %232 = vadd.xlane.f32.xlu0 %v231
  %v233 = vpop.xlane.xlu0 %232
  %v234 = vsel %vm59, %v198, 0.0
  %235 = vadd.xlane.f32.xlu0 %v234
  %v236 = vpop.xlane.xlu0 %235
  %v237 = vsel %vm59, %v199, 0.0
  %238 = vadd.xlane.f32.xlu0 %v237
  %v239 = vpop.xlane.xlu0 %238
  %v240 = vsel %vm59, %v200, 0.0
  %241 = vadd.xlane.f32.xlu0 %v240
  %v242 = vpop.xlane.xlu0 %241
  %v243 = vsel %vm59, %v201, 0.0
  %244 = vadd.xlane.f32.xlu0 %v243
  %v245 = vpop.xlane.xlu0 %244
  %v246 = vsel %vm59, %v202, 0.0
  %247 = vadd.xlane.f32.xlu0 %v246
  %v248 = vpop.xlane.xlu0 %247
  %v249 = vsel %vm59, %v203, 0.0
  %250 = vadd.xlane.f32.xlu0 %v249
  %v251 = vpop.xlane.xlu0 %250
  %v252 = vmul.f32 %v206, 0.17677669
  %v253 = vmul.f32 %v209, 0.17677669
  %v254 = vmul.f32 %v212, 0.17677669
  %v255 = vmul.f32 %v215, 0.17677669
  %v256 = vmul.f32 %v218, 0.17677669
  %v257 = vmul.f32 %v221, 0.17677669
  %v258 = vmul.f32 %v224, 0.17677669
  %v259 = vmul.f32 %v227, 0.17677669
  %v260 = vmul.f32 %v230, 0.17677669
  %v261 = vmul.f32 %v233, 0.17677669
  %v262 = vmul.f32 %v236, 0.17677669
  %v263 = vmul.f32 %v239, 0.17677669
  %v264 = vmul.f32 %v242, 0.17677669
  %v265 = vmul.f32 %v245, 0.17677669
  %v266 = vmul.f32 %v248, 0.17677669
  %v267 = vmul.f32 %v251, 0.17677669
  %268 = vrot.lane.b32.xlu0 %v27, 64
  %v269 = vpop.permute.xlu0 %268
  %270 = vrot.lane.b32.xlu0 %v28, 64
  %v271 = vpop.permute.xlu0 %270
  %272 = vrot.lane.b32.xlu0 %v29, 64
  %v273 = vpop.permute.xlu0 %272
  %274 = vrot.lane.b32.xlu0 %v30, 64
  %v275 = vpop.permute.xlu0 %274
  %276 = vrot.lane.b32.xlu0 %v31, 64
  %v277 = vpop.permute.xlu0 %276
  %278 = vrot.lane.b32.xlu0 %v32, 64
  %v279 = vpop.permute.xlu0 %278
  %280 = vrot.lane.b32.xlu0 %v33, 64
  %v281 = vpop.permute.xlu0 %280
  %282 = vrot.lane.b32.xlu0 %v34, 64
  %v283 = vpop.permute.xlu0 %282
  %284 = vrot.lane.b32.xlu0 %v35, 64
  %v285 = vpop.permute.xlu0 %284
  %286 = vrot.lane.b32.xlu0 %v36, 64
  %v287 = vpop.permute.xlu0 %286
  %288 = vrot.lane.b32.xlu0 %v37, 64
  %v289 = vpop.permute.xlu0 %288
  %290 = vrot.lane.b32.xlu0 %v38, 64
  %v291 = vpop.permute.xlu0 %290
  %292 = vrot.lane.b32.xlu0 %v39, 64
  %v293 = vpop.permute.xlu0 %292
  %294 = vrot.lane.b32.xlu0 %v40, 64
  %v295 = vpop.permute.xlu0 %294
  %296 = vrot.lane.b32.xlu0 %v41, 64
  %v297 = vpop.permute.xlu0 %296
  %298 = vrot.lane.b32.xlu0 %v42, 64
  %v299 = vpop.permute.xlu0 %298
  %v316 = vmul.f32 %v11, %v269
  %v317 = vmul.f32 %v12, %v271
  %v318 = vmul.f32 %v13, %v273
  %v319 = vmul.f32 %v14, %v275
  %v320 = vmul.f32 %v15, %v277
  %v321 = vmul.f32 %v16, %v279
  %v322 = vmul.f32 %v17, %v281
  %v323 = vmul.f32 %v18, %v283
  %v324 = vmul.f32 %v19, %v285
  %v325 = vmul.f32 %v20, %v287
  %v326 = vmul.f32 %v21, %v289
  %v327 = vmul.f32 %v22, %v291
  %v328 = vmul.f32 %v23, %v293
  %v329 = vmul.f32 %v24, %v295
  %v330 = vmul.f32 %v25, %v297
  %v331 = vmul.f32 %v26, %v299
  %v332 = vsel %vm59, %v316, 0.0
  %333 = vadd.xlane.f32.xlu0 %v332
  %v334 = vpop.xlane.xlu0 %333
  %v335 = vsel %vm59, %v317, 0.0
  %336 = vadd.xlane.f32.xlu0 %v335
  %v337 = vpop.xlane.xlu0 %336
  %v338 = vsel %vm59, %v318, 0.0
  %339 = vadd.xlane.f32.xlu0 %v338
  %v340 = vpop.xlane.xlu0 %339
  %v341 = vsel %vm59, %v319, 0.0
  %342 = vadd.xlane.f32.xlu0 %v341
  %v343 = vpop.xlane.xlu0 %342
  %v344 = vsel %vm59, %v320, 0.0
  %345 = vadd.xlane.f32.xlu0 %v344
  %v346 = vpop.xlane.xlu0 %345
  %v347 = vsel %vm59, %v321, 0.0
  %348 = vadd.xlane.f32.xlu0 %v347
  %v349 = vpop.xlane.xlu0 %348
  %v350 = vsel %vm59, %v322, 0.0
  %351 = vadd.xlane.f32.xlu0 %v350
  %v352 = vpop.xlane.xlu0 %351
  %v353 = vsel %vm59, %v323, 0.0
  %354 = vadd.xlane.f32.xlu0 %v353
  %v355 = vpop.xlane.xlu0 %354
  %v356 = vsel %vm59, %v324, 0.0
  %357 = vadd.xlane.f32.xlu0 %v356
  %v358 = vpop.xlane.xlu0 %357
  %v359 = vsel %vm59, %v325, 0.0
  %360 = vadd.xlane.f32.xlu0 %v359
  %v361 = vpop.xlane.xlu0 %360
  %v362 = vsel %vm59, %v326, 0.0
  %363 = vadd.xlane.f32.xlu0 %v362
  %v364 = vpop.xlane.xlu0 %363
  %v365 = vsel %vm59, %v327, 0.0
  %366 = vadd.xlane.f32.xlu0 %v365
  %v367 = vpop.xlane.xlu0 %366
  %v368 = vsel %vm59, %v328, 0.0
  %369 = vadd.xlane.f32.xlu0 %v368
  %v370 = vpop.xlane.xlu0 %369
  %v371 = vsel %vm59, %v329, 0.0
  %372 = vadd.xlane.f32.xlu0 %v371
  %v373 = vpop.xlane.xlu0 %372
  %v374 = vsel %vm59, %v330, 0.0
  %375 = vadd.xlane.f32.xlu0 %v374
  %v376 = vpop.xlane.xlu0 %375
  %v377 = vsel %vm59, %v331, 0.0
  %378 = vadd.xlane.f32.xlu0 %v377
  %v379 = vpop.xlane.xlu0 %378
  %v380 = vmul.f32 %v334, 0.17677669
  %v381 = vmul.f32 %v337, 0.17677669
  %v382 = vmul.f32 %v340, 0.17677669
  %v383 = vmul.f32 %v343, 0.17677669
  %v384 = vmul.f32 %v346, 0.17677669
  %v385 = vmul.f32 %v349, 0.17677669
  %v386 = vmul.f32 %v352, 0.17677669
  %v387 = vmul.f32 %v355, 0.17677669
  %v388 = vmul.f32 %v358, 0.17677669
  %v389 = vmul.f32 %v361, 0.17677669
  %v390 = vmul.f32 %v364, 0.17677669
  %v391 = vmul.f32 %v367, 0.17677669
  %v392 = vmul.f32 %v370, 0.17677669
  %v393 = vmul.f32 %v373, 0.17677669
  %v394 = vmul.f32 %v376, 0.17677669
  %v395 = vmul.f32 %v379, 0.17677669
  %396 = vrot.lane.b32.xlu0 %v27, 32
  %v397 = vpop.permute.xlu0 %396
  %398 = vrot.lane.b32.xlu0 %v28, 32
  %v399 = vpop.permute.xlu0 %398
  %400 = vrot.lane.b32.xlu0 %v29, 32
  %v401 = vpop.permute.xlu0 %400
  %402 = vrot.lane.b32.xlu0 %v30, 32
  %v403 = vpop.permute.xlu0 %402
  %404 = vrot.lane.b32.xlu0 %v31, 32
  %v405 = vpop.permute.xlu0 %404
  %406 = vrot.lane.b32.xlu0 %v32, 32
  %v407 = vpop.permute.xlu0 %406
  %408 = vrot.lane.b32.xlu0 %v33, 32
  %v409 = vpop.permute.xlu0 %408
  %410 = vrot.lane.b32.xlu0 %v34, 32
  %v411 = vpop.permute.xlu0 %410
  %412 = vrot.lane.b32.xlu0 %v35, 32
  %v413 = vpop.permute.xlu0 %412
  %414 = vrot.lane.b32.xlu0 %v36, 32
  %v415 = vpop.permute.xlu0 %414
  %416 = vrot.lane.b32.xlu0 %v37, 32
  %v417 = vpop.permute.xlu0 %416
  %418 = vrot.lane.b32.xlu0 %v38, 32
  %v419 = vpop.permute.xlu0 %418
  %420 = vrot.lane.b32.xlu0 %v39, 32
  %v421 = vpop.permute.xlu0 %420
  %422 = vrot.lane.b32.xlu0 %v40, 32
  %v423 = vpop.permute.xlu0 %422
  %424 = vrot.lane.b32.xlu0 %v41, 32
  %v425 = vpop.permute.xlu0 %424
  %426 = vrot.lane.b32.xlu0 %v42, 32
  %v427 = vpop.permute.xlu0 %426
  %v444 = vmul.f32 %v11, %v397
  %v445 = vmul.f32 %v12, %v399
  %v446 = vmul.f32 %v13, %v401
  %v447 = vmul.f32 %v14, %v403
  %v448 = vmul.f32 %v15, %v405
  %v449 = vmul.f32 %v16, %v407
  %v450 = vmul.f32 %v17, %v409
  %v451 = vmul.f32 %v18, %v411
  %v452 = vmul.f32 %v19, %v413
  %v453 = vmul.f32 %v20, %v415
  %v454 = vmul.f32 %v21, %v417
  %v455 = vmul.f32 %v22, %v419
  %v456 = vmul.f32 %v23, %v421
  %v457 = vmul.f32 %v24, %v423
  %v458 = vmul.f32 %v25, %v425
  %v459 = vmul.f32 %v26, %v427
  %v460 = vsel %vm59, %v444, 0.0
  %461 = vadd.xlane.f32.xlu0 %v460
  %v462 = vpop.xlane.xlu0 %461
  %v463 = vsel %vm59, %v445, 0.0
  %464 = vadd.xlane.f32.xlu0 %v463
  %v465 = vpop.xlane.xlu0 %464
  %v466 = vsel %vm59, %v446, 0.0
  %467 = vadd.xlane.f32.xlu0 %v466
  %v468 = vpop.xlane.xlu0 %467
  %v469 = vsel %vm59, %v447, 0.0
  %470 = vadd.xlane.f32.xlu0 %v469
  %v471 = vpop.xlane.xlu0 %470
  %v472 = vsel %vm59, %v448, 0.0
  %473 = vadd.xlane.f32.xlu0 %v472
  %v474 = vpop.xlane.xlu0 %473
  %v475 = vsel %vm59, %v449, 0.0
  %476 = vadd.xlane.f32.xlu0 %v475
  %v477 = vpop.xlane.xlu0 %476
  %v478 = vsel %vm59, %v450, 0.0
  %479 = vadd.xlane.f32.xlu0 %v478
  %v480 = vpop.xlane.xlu0 %479
  %v481 = vsel %vm59, %v451, 0.0
  %482 = vadd.xlane.f32.xlu0 %v481
  %v483 = vpop.xlane.xlu0 %482
  %v484 = vsel %vm59, %v452, 0.0
  %485 = vadd.xlane.f32.xlu0 %v484
  %v486 = vpop.xlane.xlu0 %485
  %v487 = vsel %vm59, %v453, 0.0
  %488 = vadd.xlane.f32.xlu0 %v487
  %v489 = vpop.xlane.xlu0 %488
  %v490 = vsel %vm59, %v454, 0.0
  %491 = vadd.xlane.f32.xlu0 %v490
  %v492 = vpop.xlane.xlu0 %491
  %v493 = vsel %vm59, %v455, 0.0
  %494 = vadd.xlane.f32.xlu0 %v493
  %v495 = vpop.xlane.xlu0 %494
  %v496 = vsel %vm59, %v456, 0.0
  %497 = vadd.xlane.f32.xlu0 %v496
  %v498 = vpop.xlane.xlu0 %497
  %v499 = vsel %vm59, %v457, 0.0
  %500 = vadd.xlane.f32.xlu0 %v499
  %v501 = vpop.xlane.xlu0 %500
  %v502 = vsel %vm59, %v458, 0.0
  %503 = vadd.xlane.f32.xlu0 %v502
  %v504 = vpop.xlane.xlu0 %503
  %v505 = vsel %vm59, %v459, 0.0
  %506 = vadd.xlane.f32.xlu0 %v505
  %v507 = vpop.xlane.xlu0 %506
  %v508 = vmul.f32 %v462, 0.17677669
  %v509 = vmul.f32 %v465, 0.17677669
  %v510 = vmul.f32 %v468, 0.17677669
  %v511 = vmul.f32 %v471, 0.17677669
  %v512 = vmul.f32 %v474, 0.17677669
  %v513 = vmul.f32 %v477, 0.17677669
  %v514 = vmul.f32 %v480, 0.17677669
  %v515 = vmul.f32 %v483, 0.17677669
  %v516 = vmul.f32 %v486, 0.17677669
  %v517 = vmul.f32 %v489, 0.17677669
  %v518 = vmul.f32 %v492, 0.17677669
  %v519 = vmul.f32 %v495, 0.17677669
  %v520 = vmul.f32 %v498, 0.17677669
  %v521 = vmul.f32 %v501, 0.17677669
  %v522 = vmul.f32 %v504, 0.17677669
  %v523 = vmul.f32 %v507, 0.17677669
  %v524 = vmax.f32 %v108, %v252
  %v525 = vmax.f32 %v109, %v253
  %v526 = vmax.f32 %v110, %v254
  %v527 = vmax.f32 %v111, %v255
  %v528 = vmax.f32 %v112, %v256
  %v529 = vmax.f32 %v113, %v257
  %v530 = vmax.f32 %v114, %v258
  %v531 = vmax.f32 %v115, %v259
  %v532 = vmax.f32 %v116, %v260
  %v533 = vmax.f32 %v117, %v261
  %v534 = vmax.f32 %v118, %v262
  %v535 = vmax.f32 %v119, %v263
  %v536 = vmax.f32 %v120, %v264
  %v537 = vmax.f32 %v121, %v265
  %v538 = vmax.f32 %v122, %v266
  %v539 = vmax.f32 %v123, %v267
  %v540 = vmax.f32 %v524, %v380
  %v541 = vmax.f32 %v525, %v381
  %v542 = vmax.f32 %v526, %v382
  %v543 = vmax.f32 %v527, %v383
  %v544 = vmax.f32 %v528, %v384
  %v545 = vmax.f32 %v529, %v385
  %v546 = vmax.f32 %v530, %v386
  %v547 = vmax.f32 %v531, %v387
  %v548 = vmax.f32 %v532, %v388
  %v549 = vmax.f32 %v533, %v389
  %v550 = vmax.f32 %v534, %v390
  %v551 = vmax.f32 %v535, %v391
  %v552 = vmax.f32 %v536, %v392
  %v553 = vmax.f32 %v537, %v393
  %v554 = vmax.f32 %v538, %v394
  %v555 = vmax.f32 %v539, %v395
  %v556 = vmax.f32 %v540, %v508
  %v557 = vmax.f32 %v541, %v509
  %v558 = vmax.f32 %v542, %v510
  %v559 = vmax.f32 %v543, %v511
  %v560 = vmax.f32 %v544, %v512
  %v561 = vmax.f32 %v545, %v513
  %v562 = vmax.f32 %v546, %v514
  %v563 = vmax.f32 %v547, %v515
  %v564 = vmax.f32 %v548, %v516
  %v565 = vmax.f32 %v549, %v517
  %v566 = vmax.f32 %v550, %v518
  %v567 = vmax.f32 %v551, %v519
  %v568 = vmax.f32 %v552, %v520
  %v569 = vmax.f32 %v553, %v521
  %v570 = vmax.f32 %v554, %v522
  %v571 = vmax.f32 %v555, %v523
  %v572 = vsub.f32 %v108, %v556
  %v573 = vsub.f32 %v109, %v557
  %v574 = vsub.f32 %v110, %v558
  %v575 = vsub.f32 %v111, %v559
  %v576 = vsub.f32 %v112, %v560
  %v577 = vsub.f32 %v113, %v561
  %v578 = vsub.f32 %v114, %v562
  %v579 = vsub.f32 %v115, %v563
  %v580 = vsub.f32 %v116, %v564
  %v581 = vsub.f32 %v117, %v565
  %v582 = vsub.f32 %v118, %v566
  %v583 = vsub.f32 %v119, %v567
  %v584 = vsub.f32 %v120, %v568
  %v585 = vsub.f32 %v121, %v569
  %v586 = vsub.f32 %v122, %v570
  %v587 = vsub.f32 %v123, %v571
  %v588 = vmul.f32 %v572, 1.442695
  %v589 = vpow.pop %v588
  %v590 = vmul.f32 %v573, 1.442695
  %v591 = vpow.pop %v590
  %v592 = vmul.f32 %v574, 1.442695
  %v593 = vpow.pop %v592
  %v594 = vmul.f32 %v575, 1.442695
  %v595 = vpow.pop %v594
  %v596 = vmul.f32 %v576, 1.442695
  %v597 = vpow.pop %v596
  %v598 = vmul.f32 %v577, 1.442695
  %v599 = vpow.pop %v598
  %v600 = vmul.f32 %v578, 1.442695
  %v601 = vpow.pop %v600
  %v602 = vmul.f32 %v579, 1.442695
  %v603 = vpow.pop %v602
  %v604 = vmul.f32 %v580, 1.442695
  %v605 = vpow.pop %v604
  %v606 = vmul.f32 %v581, 1.442695
  %v607 = vpow.pop %v606
  %v608 = vmul.f32 %v582, 1.442695
  %v609 = vpow.pop %v608
  %v610 = vmul.f32 %v583, 1.442695
  %v611 = vpow.pop %v610
  %v612 = vmul.f32 %v584, 1.442695
  %v613 = vpow.pop %v612
  %v614 = vmul.f32 %v585, 1.442695
  %v615 = vpow.pop %v614
  %v616 = vmul.f32 %v586, 1.442695
  %v617 = vpow.pop %v616
  %v618 = vmul.f32 %v587, 1.442695
  %v619 = vpow.pop %v618
  %v620 = vsub.f32 %v252, %v556
  %v621 = vsub.f32 %v253, %v557
  %v622 = vsub.f32 %v254, %v558
  %v623 = vsub.f32 %v255, %v559
  %v624 = vsub.f32 %v256, %v560
  %v625 = vsub.f32 %v257, %v561
  %v626 = vsub.f32 %v258, %v562
  %v627 = vsub.f32 %v259, %v563
  %v628 = vsub.f32 %v260, %v564
  %v629 = vsub.f32 %v261, %v565
  %v630 = vsub.f32 %v262, %v566
  %v631 = vsub.f32 %v263, %v567
  %v632 = vsub.f32 %v264, %v568
  %v633 = vsub.f32 %v265, %v569
  %v634 = vsub.f32 %v266, %v570
  %v635 = vsub.f32 %v267, %v571
  %v636 = vmul.f32 %v620, 1.442695
  %v637 = vpow.pop %v636
  %v638 = vmul.f32 %v621, 1.442695
  %v639 = vpow.pop %v638
  %v640 = vmul.f32 %v622, 1.442695
  %v641 = vpow.pop %v640
  %v642 = vmul.f32 %v623, 1.442695
  %v643 = vpow.pop %v642
  %v644 = vmul.f32 %v624, 1.442695
  %v645 = vpow.pop %v644
  %v646 = vmul.f32 %v625, 1.442695
  %v647 = vpow.pop %v646
  %v648 = vmul.f32 %v626, 1.442695
  %v649 = vpow.pop %v648
  %v650 = vmul.f32 %v627, 1.442695
  %v651 = vpow.pop %v650
  %v652 = vmul.f32 %v628, 1.442695
  %v653 = vpow.pop %v652
  %v654 = vmul.f32 %v629, 1.442695
  %v655 = vpow.pop %v654
  %v656 = vmul.f32 %v630, 1.442695
  %v657 = vpow.pop %v656
  %v658 = vmul.f32 %v631, 1.442695
  %v659 = vpow.pop %v658
  %v660 = vmul.f32 %v632, 1.442695
  %v661 = vpow.pop %v660
  %v662 = vmul.f32 %v633, 1.442695
  %v663 = vpow.pop %v662
  %v664 = vmul.f32 %v634, 1.442695
  %v665 = vpow.pop %v664
  %v666 = vmul.f32 %v635, 1.442695
  %v667 = vpow.pop %v666
  %v668 = vsub.f32 %v380, %v556
  %v669 = vsub.f32 %v381, %v557
  %v670 = vsub.f32 %v382, %v558
  %v671 = vsub.f32 %v383, %v559
  %v672 = vsub.f32 %v384, %v560
  %v673 = vsub.f32 %v385, %v561
  %v674 = vsub.f32 %v386, %v562
  %v675 = vsub.f32 %v387, %v563
  %v676 = vsub.f32 %v388, %v564
  %v677 = vsub.f32 %v389, %v565
  %v678 = vsub.f32 %v390, %v566
  %v679 = vsub.f32 %v391, %v567
  %v680 = vsub.f32 %v392, %v568
  %v681 = vsub.f32 %v393, %v569
  %v682 = vsub.f32 %v394, %v570
  %v683 = vsub.f32 %v395, %v571
  %v684 = vmul.f32 %v668, 1.442695
  %v685 = vpow.pop %v684
  %v686 = vmul.f32 %v669, 1.442695
  %v687 = vpow.pop %v686
  %v688 = vmul.f32 %v670, 1.442695
  %v689 = vpow.pop %v688
  %v690 = vmul.f32 %v671, 1.442695
  %v691 = vpow.pop %v690
  %v692 = vmul.f32 %v672, 1.442695
  %v693 = vpow.pop %v692
  %v694 = vmul.f32 %v673, 1.442695
  %v695 = vpow.pop %v694
  %v696 = vmul.f32 %v674, 1.442695
  %v697 = vpow.pop %v696
  %v698 = vmul.f32 %v675, 1.442695
  %v699 = vpow.pop %v698
  %v700 = vmul.f32 %v676, 1.442695
  %v701 = vpow.pop %v700
  %v702 = vmul.f32 %v677, 1.442695
  %v703 = vpow.pop %v702
  %v704 = vmul.f32 %v678, 1.442695
  %v705 = vpow.pop %v704
  %v706 = vmul.f32 %v679, 1.442695
  %v707 = vpow.pop %v706
  %v708 = vmul.f32 %v680, 1.442695
  %v709 = vpow.pop %v708
  %v710 = vmul.f32 %v681, 1.442695
  %v711 = vpow.pop %v710
  %v712 = vmul.f32 %v682, 1.442695
  %v713 = vpow.pop %v712
  %v714 = vmul.f32 %v683, 1.442695
  %v715 = vpow.pop %v714
  %v716 = vsub.f32 %v508, %v556
  %v717 = vsub.f32 %v509, %v557
  %v718 = vsub.f32 %v510, %v558
  %v719 = vsub.f32 %v511, %v559
  %v720 = vsub.f32 %v512, %v560
  %v721 = vsub.f32 %v513, %v561
  %v722 = vsub.f32 %v514, %v562
  %v723 = vsub.f32 %v515, %v563
  %v724 = vsub.f32 %v516, %v564
  %v725 = vsub.f32 %v517, %v565
  %v726 = vsub.f32 %v518, %v566
  %v727 = vsub.f32 %v519, %v567
  %v728 = vsub.f32 %v520, %v568
  %v729 = vsub.f32 %v521, %v569
  %v730 = vsub.f32 %v522, %v570
  %v731 = vsub.f32 %v523, %v571
  %v732 = vmul.f32 %v716, 1.442695
  %v733 = vpow.pop %v732
  %v734 = vmul.f32 %v717, 1.442695
  %v735 = vpow.pop %v734
  %v736 = vmul.f32 %v718, 1.442695
  %v737 = vpow.pop %v736
  %v738 = vmul.f32 %v719, 1.442695
  %v739 = vpow.pop %v738
  %v740 = vmul.f32 %v720, 1.442695
  %v741 = vpow.pop %v740
  %v742 = vmul.f32 %v721, 1.442695
  %v743 = vpow.pop %v742
  %v744 = vmul.f32 %v722, 1.442695
  %v745 = vpow.pop %v744
  %v746 = vmul.f32 %v723, 1.442695
  %v747 = vpow.pop %v746
  %v748 = vmul.f32 %v724, 1.442695
  %v749 = vpow.pop %v748
  %v750 = vmul.f32 %v725, 1.442695
  %v751 = vpow.pop %v750
  %v752 = vmul.f32 %v726, 1.442695
  %v753 = vpow.pop %v752
  %v754 = vmul.f32 %v727, 1.442695
  %v755 = vpow.pop %v754
  %v756 = vmul.f32 %v728, 1.442695
  %v757 = vpow.pop %v756
  %v758 = vmul.f32 %v729, 1.442695
  %v759 = vpow.pop %v758
  %v760 = vmul.f32 %v730, 1.442695
  %v761 = vpow.pop %v760
  %v762 = vmul.f32 %v731, 1.442695
  %v763 = vpow.pop %v762
  %v764 = vadd.f32 %v589, %v637
  %v765 = vadd.f32 %v591, %v639
  %v766 = vadd.f32 %v593, %v641
  %v767 = vadd.f32 %v595, %v643
  %v768 = vadd.f32 %v597, %v645
  %v769 = vadd.f32 %v599, %v647
  %v770 = vadd.f32 %v601, %v649
  %v771 = vadd.f32 %v603, %v651
  %v772 = vadd.f32 %v605, %v653
  %v773 = vadd.f32 %v607, %v655
  %v774 = vadd.f32 %v609, %v657
  %v775 = vadd.f32 %v611, %v659
  %v776 = vadd.f32 %v613, %v661
  %v777 = vadd.f32 %v615, %v663
  %v778 = vadd.f32 %v617, %v665
  %v779 = vadd.f32 %v619, %v667
  %v780 = vadd.f32 %v764, %v685
  %v781 = vadd.f32 %v765, %v687
  %v782 = vadd.f32 %v766, %v689
  %v783 = vadd.f32 %v767, %v691
  %v784 = vadd.f32 %v768, %v693
  %v785 = vadd.f32 %v769, %v695
  %v786 = vadd.f32 %v770, %v697
  %v787 = vadd.f32 %v771, %v699
  %v788 = vadd.f32 %v772, %v701
  %v789 = vadd.f32 %v773, %v703
  %v790 = vadd.f32 %v774, %v705
  %v791 = vadd.f32 %v775, %v707
  %v792 = vadd.f32 %v776, %v709
  %v793 = vadd.f32 %v777, %v711
  %v794 = vadd.f32 %v778, %v713
  %v795 = vadd.f32 %v779, %v715
  %v796 = vadd.f32 %v780, %v733
  %v797 = vadd.f32 %v781, %v735
  %v798 = vadd.f32 %v782, %v737
  %v799 = vadd.f32 %v783, %v739
  %v800 = vadd.f32 %v784, %v741
  %v801 = vadd.f32 %v785, %v743
  %v802 = vadd.f32 %v786, %v745
  %v803 = vadd.f32 %v787, %v747
  %v804 = vadd.f32 %v788, %v749
  %v805 = vadd.f32 %v789, %v751
  %v806 = vadd.f32 %v790, %v753
  %v807 = vadd.f32 %v791, %v755
  %v808 = vadd.f32 %v792, %v757
  %v809 = vadd.f32 %v793, %v759
  %v810 = vadd.f32 %v794, %v761
  %v811 = vadd.f32 %v795, %v763
  %v812 = vrcp.pop %v796
  %v813 = vmul.f32 %v796, %v812
  %v814 = vsub.f32 1.0, %v813
  %v815 = vmul.f32 %v812, %v814
  %v816 = vadd.f32 %v812, %v815
  %vm817 = vweird.f32 %v796
  %vm818 = vweird.f32 %v812
  %vm819 = vmor %vm817, %vm818
  %v820 = vsel %vm819, %v812, %v816
  %v821 = vand.u32 2147483647, %v796
  %vm822 = vcmp.eq.f32.partialorder %v821, 8.507059e+37
  %v823 = vand.u32 %v796, 2147483648
  %v824 = vor.u32 1.1754944e-38, %v823
  %v825 = vsel %vm822, %v824, %v820
  %v826 = vmul.f32 1.0, %v825
  %v827 = vrcp.pop %v797
  %v828 = vmul.f32 %v797, %v827
  %v829 = vsub.f32 1.0, %v828
  %v830 = vmul.f32 %v827, %v829
  %v831 = vadd.f32 %v827, %v830
  %vm832 = vweird.f32 %v797
  %vm833 = vweird.f32 %v827
  %vm834 = vmor %vm832, %vm833
  %v835 = vsel %vm834, %v827, %v831
  %v836 = vand.u32 2147483647, %v797
  %vm837 = vcmp.eq.f32.partialorder %v836, 8.507059e+37
  %v838 = vand.u32 %v797, 2147483648
  %v839 = vor.u32 1.1754944e-38, %v838
  %v840 = vsel %vm837, %v839, %v835
  %v841 = vmul.f32 1.0, %v840
  %v842 = vrcp.pop %v798
  %v843 = vmul.f32 %v798, %v842
  %v844 = vsub.f32 1.0, %v843
  %v845 = vmul.f32 %v842, %v844
  %v846 = vadd.f32 %v842, %v845
  %vm847 = vweird.f32 %v798
  %vm848 = vweird.f32 %v842
  %vm849 = vmor %vm847, %vm848
  %v850 = vsel %vm849, %v842, %v846
  %v851 = vand.u32 2147483647, %v798
  %vm852 = vcmp.eq.f32.partialorder %v851, 8.507059e+37
  %v853 = vand.u32 %v798, 2147483648
  %v854 = vor.u32 1.1754944e-38, %v853
  %v855 = vsel %vm852, %v854, %v850
  %v856 = vmul.f32 1.0, %v855
  %v857 = vrcp.pop %v799
  %v858 = vmul.f32 %v799, %v857
  %v859 = vsub.f32 1.0, %v858
  %v860 = vmul.f32 %v857, %v859
  %v861 = vadd.f32 %v857, %v860
  %vm862 = vweird.f32 %v799
  %vm863 = vweird.f32 %v857
  %vm864 = vmor %vm862, %vm863
  %v865 = vsel %vm864, %v857, %v861
  %v866 = vand.u32 2147483647, %v799
  %vm867 = vcmp.eq.f32.partialorder %v866, 8.507059e+37
  %v868 = vand.u32 %v799, 2147483648
  %v869 = vor.u32 1.1754944e-38, %v868
  %v870 = vsel %vm867, %v869, %v865
  %v871 = vmul.f32 1.0, %v870
  %v872 = vrcp.pop %v800
  %v873 = vmul.f32 %v800, %v872
  %v874 = vsub.f32 1.0, %v873
  %v875 = vmul.f32 %v872, %v874
  %v876 = vadd.f32 %v872, %v875
  %vm877 = vweird.f32 %v800
  %vm878 = vweird.f32 %v872
  %vm879 = vmor %vm877, %vm878
  %v880 = vsel %vm879, %v872, %v876
  %v881 = vand.u32 2147483647, %v800
  %vm882 = vcmp.eq.f32.partialorder %v881, 8.507059e+37
  %v883 = vand.u32 %v800, 2147483648
  %v884 = vor.u32 1.1754944e-38, %v883
  %v885 = vsel %vm882, %v884, %v880
  %v886 = vmul.f32 1.0, %v885
  %v887 = vrcp.pop %v801
  %v888 = vmul.f32 %v801, %v887
  %v889 = vsub.f32 1.0, %v888
  %v890 = vmul.f32 %v887, %v889
  %v891 = vadd.f32 %v887, %v890
  %vm892 = vweird.f32 %v801
  %vm893 = vweird.f32 %v887
  %vm894 = vmor %vm892, %vm893
  %v895 = vsel %vm894, %v887, %v891
  %v896 = vand.u32 2147483647, %v801
  %vm897 = vcmp.eq.f32.partialorder %v896, 8.507059e+37
  %v898 = vand.u32 %v801, 2147483648
  %v899 = vor.u32 1.1754944e-38, %v898
  %v900 = vsel %vm897, %v899, %v895
  %v901 = vmul.f32 1.0, %v900
  %v902 = vrcp.pop %v802
  %v903 = vmul.f32 %v802, %v902
  %v904 = vsub.f32 1.0, %v903
  %v905 = vmul.f32 %v902, %v904
  %v906 = vadd.f32 %v902, %v905
  %vm907 = vweird.f32 %v802
  %vm908 = vweird.f32 %v902
  %vm909 = vmor %vm907, %vm908
  %v910 = vsel %vm909, %v902, %v906
  %v911 = vand.u32 2147483647, %v802
  %vm912 = vcmp.eq.f32.partialorder %v911, 8.507059e+37
  %v913 = vand.u32 %v802, 2147483648
  %v914 = vor.u32 1.1754944e-38, %v913
  %v915 = vsel %vm912, %v914, %v910
  %v916 = vmul.f32 1.0, %v915
  %v917 = vrcp.pop %v803
  %v918 = vmul.f32 %v803, %v917
  %v919 = vsub.f32 1.0, %v918
  %v920 = vmul.f32 %v917, %v919
  %v921 = vadd.f32 %v917, %v920
  %vm922 = vweird.f32 %v803
  %vm923 = vweird.f32 %v917
  %vm924 = vmor %vm922, %vm923
  %v925 = vsel %vm924, %v917, %v921
  %v926 = vand.u32 2147483647, %v803
  %vm927 = vcmp.eq.f32.partialorder %v926, 8.507059e+37
  %v928 = vand.u32 %v803, 2147483648
  %v929 = vor.u32 1.1754944e-38, %v928
  %v930 = vsel %vm927, %v929, %v925
  %v931 = vmul.f32 1.0, %v930
  %v932 = vrcp.pop %v804
  %v933 = vmul.f32 %v804, %v932
  %v934 = vsub.f32 1.0, %v933
  %v935 = vmul.f32 %v932, %v934
  %v936 = vadd.f32 %v932, %v935
  %vm937 = vweird.f32 %v804
  %vm938 = vweird.f32 %v932
  %vm939 = vmor %vm937, %vm938
  %v940 = vsel %vm939, %v932, %v936
  %v941 = vand.u32 2147483647, %v804
  %vm942 = vcmp.eq.f32.partialorder %v941, 8.507059e+37
  %v943 = vand.u32 %v804, 2147483648
  %v944 = vor.u32 1.1754944e-38, %v943
  %v945 = vsel %vm942, %v944, %v940
  %v946 = vmul.f32 1.0, %v945
  %v947 = vrcp.pop %v805
  %v948 = vmul.f32 %v805, %v947
  %v949 = vsub.f32 1.0, %v948
  %v950 = vmul.f32 %v947, %v949
  %v951 = vadd.f32 %v947, %v950
  %vm952 = vweird.f32 %v805
  %vm953 = vweird.f32 %v947
  %vm954 = vmor %vm952, %vm953
  %v955 = vsel %vm954, %v947, %v951
  %v956 = vand.u32 2147483647, %v805
  %vm957 = vcmp.eq.f32.partialorder %v956, 8.507059e+37
  %v958 = vand.u32 %v805, 2147483648
  %v959 = vor.u32 1.1754944e-38, %v958
  %v960 = vsel %vm957, %v959, %v955
  %v961 = vmul.f32 1.0, %v960
  %v962 = vrcp.pop %v806
  %v963 = vmul.f32 %v806, %v962
  %v964 = vsub.f32 1.0, %v963
  %v965 = vmul.f32 %v962, %v964
  %v966 = vadd.f32 %v962, %v965
  %vm967 = vweird.f32 %v806
  %vm968 = vweird.f32 %v962
  %vm969 = vmor %vm967, %vm968
  %v970 = vsel %vm969, %v962, %v966
  %v971 = vand.u32 2147483647, %v806
  %vm972 = vcmp.eq.f32.partialorder %v971, 8.507059e+37
  %v973 = vand.u32 %v806, 2147483648
  %v974 = vor.u32 1.1754944e-38, %v973
  %v975 = vsel %vm972, %v974, %v970
  %v976 = vmul.f32 1.0, %v975
  %v977 = vrcp.pop %v807
  %v978 = vmul.f32 %v807, %v977
  %v979 = vsub.f32 1.0, %v978
  %v980 = vmul.f32 %v977, %v979
  %v981 = vadd.f32 %v977, %v980
  %vm982 = vweird.f32 %v807
  %vm983 = vweird.f32 %v977
  %vm984 = vmor %vm982, %vm983
  %v985 = vsel %vm984, %v977, %v981
  %v986 = vand.u32 2147483647, %v807
  %vm987 = vcmp.eq.f32.partialorder %v986, 8.507059e+37
  %v988 = vand.u32 %v807, 2147483648
  %v989 = vor.u32 1.1754944e-38, %v988
  %v990 = vsel %vm987, %v989, %v985
  %v991 = vmul.f32 1.0, %v990
  %v992 = vrcp.pop %v808
  %v993 = vmul.f32 %v808, %v992
  %v994 = vsub.f32 1.0, %v993
  %v995 = vmul.f32 %v992, %v994
  %v996 = vadd.f32 %v992, %v995
  %vm997 = vweird.f32 %v808
  %vm998 = vweird.f32 %v992
  %vm999 = vmor %vm997, %vm998
  %v1000 = vsel %vm999, %v992, %v996
  %v1001 = vand.u32 2147483647, %v808
  %vm1002 = vcmp.eq.f32.partialorder %v1001, 8.507059e+37
  %v1003 = vand.u32 %v808, 2147483648
  %v1004 = vor.u32 1.1754944e-38, %v1003
  %v1005 = vsel %vm1002, %v1004, %v1000
  %v1006 = vmul.f32 1.0, %v1005
  %v1007 = vrcp.pop %v809
  %v1008 = vmul.f32 %v809, %v1007
  %v1009 = vsub.f32 1.0, %v1008
  %v1010 = vmul.f32 %v1007, %v1009
  %v1011 = vadd.f32 %v1007, %v1010
  %vm1012 = vweird.f32 %v809
  %vm1013 = vweird.f32 %v1007
  %vm1014 = vmor %vm1012, %vm1013
  %v1015 = vsel %vm1014, %v1007, %v1011
  %v1016 = vand.u32 2147483647, %v809
  %vm1017 = vcmp.eq.f32.partialorder %v1016, 8.507059e+37
  %v1018 = vand.u32 %v809, 2147483648
  %v1019 = vor.u32 1.1754944e-38, %v1018
  %v1020 = vsel %vm1017, %v1019, %v1015
  %v1021 = vmul.f32 1.0, %v1020
  %v1022 = vrcp.pop %v810
  %v1023 = vmul.f32 %v810, %v1022
  %v1024 = vsub.f32 1.0, %v1023
  %v1025 = vmul.f32 %v1022, %v1024
  %v1026 = vadd.f32 %v1022, %v1025
  %vm1027 = vweird.f32 %v810
  %vm1028 = vweird.f32 %v1022
  %vm1029 = vmor %vm1027, %vm1028
  %v1030 = vsel %vm1029, %v1022, %v1026
  %v1031 = vand.u32 2147483647, %v810
  %vm1032 = vcmp.eq.f32.partialorder %v1031, 8.507059e+37
  %v1033 = vand.u32 %v810, 2147483648
  %v1034 = vor.u32 1.1754944e-38, %v1033
  %v1035 = vsel %vm1032, %v1034, %v1030
  %v1036 = vmul.f32 1.0, %v1035
  %v1037 = vrcp.pop %v811
  %v1038 = vmul.f32 %v811, %v1037
  %v1039 = vsub.f32 1.0, %v1038
  %v1040 = vmul.f32 %v1037, %v1039
  %v1041 = vadd.f32 %v1037, %v1040
  %vm1042 = vweird.f32 %v811
  %vm1043 = vweird.f32 %v1037
  %vm1044 = vmor %vm1042, %vm1043
  %v1045 = vsel %vm1044, %v1037, %v1041
  %v1046 = vand.u32 2147483647, %v811
  %vm1047 = vcmp.eq.f32.partialorder %v1046, 8.507059e+37
  %v1048 = vand.u32 %v811, 2147483648
  %v1049 = vor.u32 1.1754944e-38, %v1048
  %v1050 = vsel %vm1047, %v1049, %v1045
  %v1051 = vmul.f32 1.0, %v1050
  %v1052 = vmul.f32 %v589, %v826
  %v1053 = vmul.f32 %v591, %v841
  %v1054 = vmul.f32 %v593, %v856
  %v1055 = vmul.f32 %v595, %v871
  %v1056 = vmul.f32 %v597, %v886
  %v1057 = vmul.f32 %v599, %v901
  %v1058 = vmul.f32 %v601, %v916
  %v1059 = vmul.f32 %v603, %v931
  %v1060 = vmul.f32 %v605, %v946
  %v1061 = vmul.f32 %v607, %v961
  %v1062 = vmul.f32 %v609, %v976
  %v1063 = vmul.f32 %v611, %v991
  %v1064 = vmul.f32 %v613, %v1006
  %v1065 = vmul.f32 %v615, %v1021
  %v1066 = vmul.f32 %v617, %v1036
  %v1067 = vmul.f32 %v619, %v1051
  %v1068 = vmul.f32 %v1052, %v27
  %v1069 = vmul.f32 %v1053, %v28
  %v1070 = vmul.f32 %v1054, %v29
  %v1071 = vmul.f32 %v1055, %v30
  %v1072 = vmul.f32 %v1056, %v31
  %v1073 = vmul.f32 %v1057, %v32
  %v1074 = vmul.f32 %v1058, %v33
  %v1075 = vmul.f32 %v1059, %v34
  %v1076 = vmul.f32 %v1060, %v35
  %v1077 = vmul.f32 %v1061, %v36
  %v1078 = vmul.f32 %v1062, %v37
  %v1079 = vmul.f32 %v1063, %v38
  %v1080 = vmul.f32 %v1064, %v39
  %v1081 = vmul.f32 %v1065, %v40
  %v1082 = vmul.f32 %v1066, %v41
  %v1083 = vmul.f32 %v1067, %v42
  %v1084 = vadd.f32 %v11, %v1068
  %v1085 = vadd.f32 %v12, %v1069
  %v1086 = vadd.f32 %v13, %v1070
  %v1087 = vadd.f32 %v14, %v1071
  %v1088 = vadd.f32 %v15, %v1072
  %v1089 = vadd.f32 %v16, %v1073
  %v1090 = vadd.f32 %v17, %v1074
  %v1091 = vadd.f32 %v18, %v1075
  %v1092 = vadd.f32 %v19, %v1076
  %v1093 = vadd.f32 %v20, %v1077
  %v1094 = vadd.f32 %v21, %v1078
  %v1095 = vadd.f32 %v22, %v1079
  %v1096 = vadd.f32 %v23, %v1080
  %v1097 = vadd.f32 %v24, %v1081
  %v1098 = vadd.f32 %v25, %v1082
  %v1099 = vadd.f32 %v26, %v1083
  %v1100 = vmul.f32 %v637, %v826
  %v1101 = vmul.f32 %v639, %v841
  %v1102 = vmul.f32 %v641, %v856
  %v1103 = vmul.f32 %v643, %v871
  %v1104 = vmul.f32 %v645, %v886
  %v1105 = vmul.f32 %v647, %v901
  %v1106 = vmul.f32 %v649, %v916
  %v1107 = vmul.f32 %v651, %v931
  %v1108 = vmul.f32 %v653, %v946
  %v1109 = vmul.f32 %v655, %v961
  %v1110 = vmul.f32 %v657, %v976
  %v1111 = vmul.f32 %v659, %v991
  %v1112 = vmul.f32 %v661, %v1006
  %v1113 = vmul.f32 %v663, %v1021
  %v1114 = vmul.f32 %v665, %v1036
  %v1115 = vmul.f32 %v667, %v1051
  %v1116 = vmul.f32 %v1100, %v27
  %v1117 = vmul.f32 %v1101, %v28
  %v1118 = vmul.f32 %v1102, %v29
  %v1119 = vmul.f32 %v1103, %v30
  %v1120 = vmul.f32 %v1104, %v31
  %v1121 = vmul.f32 %v1105, %v32
  %v1122 = vmul.f32 %v1106, %v33
  %v1123 = vmul.f32 %v1107, %v34
  %v1124 = vmul.f32 %v1108, %v35
  %v1125 = vmul.f32 %v1109, %v36
  %v1126 = vmul.f32 %v1110, %v37
  %v1127 = vmul.f32 %v1111, %v38
  %v1128 = vmul.f32 %v1112, %v39
  %v1129 = vmul.f32 %v1113, %v40
  %v1130 = vmul.f32 %v1114, %v41
  %v1131 = vmul.f32 %v1115, %v42
  %1148 = vrot.lane.b32.xlu0 %v1116, 96
  %v1149 = vpop.permute.xlu0 %1148
  %1150 = vrot.lane.b32.xlu0 %v1117, 96
  %v1151 = vpop.permute.xlu0 %1150
  %1152 = vrot.lane.b32.xlu0 %v1118, 96
  %v1153 = vpop.permute.xlu0 %1152
  %1154 = vrot.lane.b32.xlu0 %v1119, 96
  %v1155 = vpop.permute.xlu0 %1154
  %1156 = vrot.lane.b32.xlu0 %v1120, 96
  %v1157 = vpop.permute.xlu0 %1156
  %1158 = vrot.lane.b32.xlu0 %v1121, 96
  %v1159 = vpop.permute.xlu0 %1158
  %1160 = vrot.lane.b32.xlu0 %v1122, 96
  %v1161 = vpop.permute.xlu0 %1160
  %1162 = vrot.lane.b32.xlu0 %v1123, 96
  %v1163 = vpop.permute.xlu0 %1162
  %1164 = vrot.lane.b32.xlu0 %v1124, 96
  %v1165 = vpop.permute.xlu0 %1164
  %1166 = vrot.lane.b32.xlu0 %v1125, 96
  %v1167 = vpop.permute.xlu0 %1166
  %1168 = vrot.lane.b32.xlu0 %v1126, 96
  %v1169 = vpop.permute.xlu0 %1168
  %1170 = vrot.lane.b32.xlu0 %v1127, 96
  %v1171 = vpop.permute.xlu0 %1170
  %1172 = vrot.lane.b32.xlu0 %v1128, 96
  %v1173 = vpop.permute.xlu0 %1172
  %1174 = vrot.lane.b32.xlu0 %v1129, 96
  %v1175 = vpop.permute.xlu0 %1174
  %1176 = vrot.lane.b32.xlu0 %v1130, 96
  %v1177 = vpop.permute.xlu0 %1176
  %1178 = vrot.lane.b32.xlu0 %v1131, 96
  %v1179 = vpop.permute.xlu0 %1178
  %v1196 = vadd.f32 %v1084, %v1149
  %v1197 = vadd.f32 %v1085, %v1151
  %v1198 = vadd.f32 %v1086, %v1153
  %v1199 = vadd.f32 %v1087, %v1155
  %v1200 = vadd.f32 %v1088, %v1157
  %v1201 = vadd.f32 %v1089, %v1159
  %v1202 = vadd.f32 %v1090, %v1161
  %v1203 = vadd.f32 %v1091, %v1163
  %v1204 = vadd.f32 %v1092, %v1165
  %v1205 = vadd.f32 %v1093, %v1167
  %v1206 = vadd.f32 %v1094, %v1169
  %v1207 = vadd.f32 %v1095, %v1171
  %v1208 = vadd.f32 %v1096, %v1173
  %v1209 = vadd.f32 %v1097, %v1175
  %v1210 = vadd.f32 %v1098, %v1177
  %v1211 = vadd.f32 %v1099, %v1179
  %v1212 = vmul.f32 %v685, %v826
  %v1213 = vmul.f32 %v687, %v841
  %v1214 = vmul.f32 %v689, %v856
  %v1215 = vmul.f32 %v691, %v871
  %v1216 = vmul.f32 %v693, %v886
  %v1217 = vmul.f32 %v695, %v901
  %v1218 = vmul.f32 %v697, %v916
  %v1219 = vmul.f32 %v699, %v931
  %v1220 = vmul.f32 %v701, %v946
  %v1221 = vmul.f32 %v703, %v961
  %v1222 = vmul.f32 %v705, %v976
  %v1223 = vmul.f32 %v707, %v991
  %v1224 = vmul.f32 %v709, %v1006
  %v1225 = vmul.f32 %v711, %v1021
  %v1226 = vmul.f32 %v713, %v1036
  %v1227 = vmul.f32 %v715, %v1051
  %v1228 = vmul.f32 %v1212, %v27
  %v1229 = vmul.f32 %v1213, %v28
  %v1230 = vmul.f32 %v1214, %v29
  %v1231 = vmul.f32 %v1215, %v30
  %v1232 = vmul.f32 %v1216, %v31
  %v1233 = vmul.f32 %v1217, %v32
  %v1234 = vmul.f32 %v1218, %v33
  %v1235 = vmul.f32 %v1219, %v34
  %v1236 = vmul.f32 %v1220, %v35
  %v1237 = vmul.f32 %v1221, %v36
  %v1238 = vmul.f32 %v1222, %v37
  %v1239 = vmul.f32 %v1223, %v38
  %v1240 = vmul.f32 %v1224, %v39
  %v1241 = vmul.f32 %v1225, %v40
  %v1242 = vmul.f32 %v1226, %v41
  %v1243 = vmul.f32 %v1227, %v42
  %1260 = vrot.lane.b32.xlu0 %v1228, 64
  %v1261 = vpop.permute.xlu0 %1260
  %1262 = vrot.lane.b32.xlu0 %v1229, 64
  %v1263 = vpop.permute.xlu0 %1262
  %1264 = vrot.lane.b32.xlu0 %v1230, 64
  %v1265 = vpop.permute.xlu0 %1264
  %1266 = vrot.lane.b32.xlu0 %v1231, 64
  %v1267 = vpop.permute.xlu0 %1266
  %1268 = vrot.lane.b32.xlu0 %v1232, 64
  %v1269 = vpop.permute.xlu0 %1268
  %1270 = vrot.lane.b32.xlu0 %v1233, 64
  %v1271 = vpop.permute.xlu0 %1270
  %1272 = vrot.lane.b32.xlu0 %v1234, 64
  %v1273 = vpop.permute.xlu0 %1272
  %1274 = vrot.lane.b32.xlu0 %v1235, 64
  %v1275 = vpop.permute.xlu0 %1274
  %1276 = vrot.lane.b32.xlu0 %v1236, 64
  %v1277 = vpop.permute.xlu0 %1276
  %1278 = vrot.lane.b32.xlu0 %v1237, 64
  %v1279 = vpop.permute.xlu0 %1278
  %1280 = vrot.lane.b32.xlu0 %v1238, 64
  %v1281 = vpop.permute.xlu0 %1280
  %1282 = vrot.lane.b32.xlu0 %v1239, 64
  %v1283 = vpop.permute.xlu0 %1282
  %1284 = vrot.lane.b32.xlu0 %v1240, 64
  %v1285 = vpop.permute.xlu0 %1284
  %1286 = vrot.lane.b32.xlu0 %v1241, 64
  %v1287 = vpop.permute.xlu0 %1286
  %1288 = vrot.lane.b32.xlu0 %v1242, 64
  %v1289 = vpop.permute.xlu0 %1288
  %1290 = vrot.lane.b32.xlu0 %v1243, 64
  %v1291 = vpop.permute.xlu0 %1290
  %v1308 = vadd.f32 %v1196, %v1261
  %v1309 = vadd.f32 %v1197, %v1263
  %v1310 = vadd.f32 %v1198, %v1265
  %v1311 = vadd.f32 %v1199, %v1267
  %v1312 = vadd.f32 %v1200, %v1269
  %v1313 = vadd.f32 %v1201, %v1271
  %v1314 = vadd.f32 %v1202, %v1273
  %v1315 = vadd.f32 %v1203, %v1275
  %v1316 = vadd.f32 %v1204, %v1277
  %v1317 = vadd.f32 %v1205, %v1279
  %v1318 = vadd.f32 %v1206, %v1281
  %v1319 = vadd.f32 %v1207, %v1283
  %v1320 = vadd.f32 %v1208, %v1285
  %v1321 = vadd.f32 %v1209, %v1287
  %v1322 = vadd.f32 %v1210, %v1289
  %v1323 = vadd.f32 %v1211, %v1291
  %v1324 = vmul.f32 %v733, %v826
  %v1325 = vmul.f32 %v735, %v841
  %v1326 = vmul.f32 %v737, %v856
  %v1327 = vmul.f32 %v739, %v871
  %v1328 = vmul.f32 %v741, %v886
  %v1329 = vmul.f32 %v743, %v901
  %v1330 = vmul.f32 %v745, %v916
  %v1331 = vmul.f32 %v747, %v931
  %v1332 = vmul.f32 %v749, %v946
  %v1333 = vmul.f32 %v751, %v961
  %v1334 = vmul.f32 %v753, %v976
  %v1335 = vmul.f32 %v755, %v991
  %v1336 = vmul.f32 %v757, %v1006
  %v1337 = vmul.f32 %v759, %v1021
  %v1338 = vmul.f32 %v761, %v1036
  %v1339 = vmul.f32 %v763, %v1051
  %v1340 = vmul.f32 %v1324, %v27
  %v1341 = vmul.f32 %v1325, %v28
  %v1342 = vmul.f32 %v1326, %v29
  %v1343 = vmul.f32 %v1327, %v30
  %v1344 = vmul.f32 %v1328, %v31
  %v1345 = vmul.f32 %v1329, %v32
  %v1346 = vmul.f32 %v1330, %v33
  %v1347 = vmul.f32 %v1331, %v34
  %v1348 = vmul.f32 %v1332, %v35
  %v1349 = vmul.f32 %v1333, %v36
  %v1350 = vmul.f32 %v1334, %v37
  %v1351 = vmul.f32 %v1335, %v38
  %v1352 = vmul.f32 %v1336, %v39
  %v1353 = vmul.f32 %v1337, %v40
  %v1354 = vmul.f32 %v1338, %v41
  %v1355 = vmul.f32 %v1339, %v42
  %1372 = vrot.lane.b32.xlu0 %v1340, 32
  %v1373 = vpop.permute.xlu0 %1372
  %1374 = vrot.lane.b32.xlu0 %v1341, 32
  %v1375 = vpop.permute.xlu0 %1374
  %1376 = vrot.lane.b32.xlu0 %v1342, 32
  %v1377 = vpop.permute.xlu0 %1376
  %1378 = vrot.lane.b32.xlu0 %v1343, 32
  %v1379 = vpop.permute.xlu0 %1378
  %1380 = vrot.lane.b32.xlu0 %v1344, 32
  %v1381 = vpop.permute.xlu0 %1380
  %1382 = vrot.lane.b32.xlu0 %v1345, 32
  %v1383 = vpop.permute.xlu0 %1382
  %1384 = vrot.lane.b32.xlu0 %v1346, 32
  %v1385 = vpop.permute.xlu0 %1384
  %1386 = vrot.lane.b32.xlu0 %v1347, 32
  %v1387 = vpop.permute.xlu0 %1386
  %1388 = vrot.lane.b32.xlu0 %v1348, 32
  %v1389 = vpop.permute.xlu0 %1388
  %1390 = vrot.lane.b32.xlu0 %v1349, 32
  %v1391 = vpop.permute.xlu0 %1390
  %1392 = vrot.lane.b32.xlu0 %v1350, 32
  %v1393 = vpop.permute.xlu0 %1392
  %1394 = vrot.lane.b32.xlu0 %v1351, 32
  %v1395 = vpop.permute.xlu0 %1394
  %1396 = vrot.lane.b32.xlu0 %v1352, 32
  %v1397 = vpop.permute.xlu0 %1396
  %1398 = vrot.lane.b32.xlu0 %v1353, 32
  %v1399 = vpop.permute.xlu0 %1398
  %1400 = vrot.lane.b32.xlu0 %v1354, 32
  %v1401 = vpop.permute.xlu0 %1400
  %1402 = vrot.lane.b32.xlu0 %v1355, 32
  %v1403 = vpop.permute.xlu0 %1402
  %v1420 = vadd.f32 %v1308, %v1373
  %v1421 = vadd.f32 %v1309, %v1375
  %v1422 = vadd.f32 %v1310, %v1377
  %v1423 = vadd.f32 %v1311, %v1379
  %v1424 = vadd.f32 %v1312, %v1381
  %v1425 = vadd.f32 %v1313, %v1383
  %v1426 = vadd.f32 %v1314, %v1385
  %v1427 = vadd.f32 %v1315, %v1387
  %v1428 = vadd.f32 %v1316, %v1389
  %v1429 = vadd.f32 %v1317, %v1391
  %v1430 = vadd.f32 %v1318, %v1393
  %v1431 = vadd.f32 %v1319, %v1395
  %v1432 = vadd.f32 %v1320, %v1397
  %v1433 = vadd.f32 %v1321, %v1399
  %v1434 = vadd.f32 %v1322, %v1401
  %v1435 = vadd.f32 %v1323, %v1403
  %1436 = vst.msk [vmem:[%s2] sm:$0xff] %vm59, %v1420
  %1437 = vst.msk [vmem:[%s2 + $0x8] sm:$0xff] %vm59, %v1421
  %1438 = vst.msk [vmem:[%s2 + $0x10] sm:$0xff] %vm59, %v1422
  %1439 = vst.msk [vmem:[%s2 + $0x18] sm:$0xff] %vm59, %v1423
  %1440 = vst.msk [vmem:[%s2 + $0x20] sm:$0xff] %vm59, %v1424
  %1441 = vst.msk [vmem:[%s2 + $0x28] sm:$0xff] %vm59, %v1425
  %1442 = vst.msk [vmem:[%s2 + $0x30] sm:$0xff] %vm59, %v1426
  %1443 = vst.msk [vmem:[%s2 + $0x38] sm:$0xff] %vm59, %v1427
  %1444 = vst.msk [vmem:[%s2 + $0x40] sm:$0xff] %vm59, %v1428
  %1445 = vst.msk [vmem:[%s2 + $0x48] sm:$0xff] %vm59, %v1429
  %1446 = vst.msk [vmem:[%s2 + $0x50] sm:$0xff] %vm59, %v1430
  %1447 = vst.msk [vmem:[%s2 + $0x58] sm:$0xff] %vm59, %v1431
  %1448 = vst.msk [vmem:[%s2 + $0x60] sm:$0xff] %vm59, %v1432
  %1449 = vst.msk [vmem:[%s2 + $0x68] sm:$0xff] %vm59, %v1433
  %1450 = vst.msk [vmem:[%s2 + $0x70] sm:$0xff] %vm59, %v1434
  %1451 = vst.msk [vmem:[%s2 + $0x78] sm:$0xff] %vm59, %v1435
  // Predicated region
  $region10: #{attention_encoder.1} parent=0 // pred_check
    _
  $region11: #{attention_encoder.1} parent=0 // pred_check_branch
    %1453 = sbr.rel (0) target = $region13
  $region12: #{attention_encoder.1} parent=0 // pred_region
    _
  $region13: #{attention_encoder.1} parent=0 // pred_fallthru
    _
  // Predicated region
  $region14: #{attention_encoder.1} parent=0 // pred_check
    _
  $region15: #{attention_encoder.1} parent=0 // pred_check_branch
    %1455 = sbr.rel (0) target = $region17
  $region16: #{attention_encoder.1} parent=0 // pred_region
    _
  $region17: #{attention_encoder.1} parent=0 // pred_fallthru
    _

</llo_original>
